<compile_context>
chip_gen: v6e
topology: v6e:2x2x1
jax: 0.10.0
libtpu: 0.0.40
codegen_flags: <defaults>
</compile_context>

<pallas_src>
import functools

import jax
import jax.numpy as jnp
from jax.experimental import pallas as pl
from jax.experimental.pallas import tpu as pltpu


def _round_up(n, m):
    return ((n + m - 1) // m) * m


def mlp_kernel(x_ref, w1_ref, b1_ref, w2_ref, b2_ref, w3_ref, b3_ref, o_ref):
    # fc1 + ReLU   (dropout1 = identity in eval mode)
    # x arrives f32 from HBM (read once, unpadded) and is cast to bf16 in VMEM.
    x = x_ref[...].astype(jnp.bfloat16)
    h1 = jnp.dot(x, w1_ref[...], preferred_element_type=jnp.float32)
    h1 = jnp.maximum(h1 + b1_ref[...], 0.0)

    # fc2 + ReLU   (dropout2 = identity in eval mode)
    h2 = jnp.dot(h1.astype(jnp.bfloat16), w2_ref[...],
                 preferred_element_type=jnp.float32)
    h2 = jnp.maximum(h2 + b2_ref[...], 0.0)

    # fc3 logits, lane-dense (padded to 128 classes), bf16 store
    out = jnp.dot(h2.astype(jnp.bfloat16), w3_ref[...],
                  preferred_element_type=jnp.float32)
    o_ref[...] = (out + b3_ref[...]).astype(o_ref.dtype)


def prepare_params(w1, b1, w2, b2, w3, b3):
    """One-time setup (outside the per-call hot path).

    Weights are pre-transposed layout (in, out); fc3 is zero-padded to a
    lane-dense class width; matmul operands pre-cast to bf16."""
    C = w3.shape[1]
    Cp = _round_up(max(C, 128), 128)
    params = dict(
        w1=w1.astype(jnp.bfloat16),
        b1=b1.astype(jnp.float32),
        w2=w2.astype(jnp.bfloat16),
        b2=b2.astype(jnp.float32),
        w3=jnp.pad(w3, ((0, 0), (0, Cp - C))).astype(jnp.bfloat16),
        b3=jnp.pad(b3, ((0, 0), (0, Cp - C))).astype(jnp.float32),
    )
    return params, C


@functools.partial(jax.jit, static_argnames=("num_classes", "tm"))
def two_hidden_mlp(x, params, *, num_classes, tm=2048):
    """x: (B, D) f32. params: output of prepare_params. Returns (B, C) f32."""
    B, D = x.shape
    w1, b1 = params["w1"], params["b1"]
    w2, b2 = params["w2"], params["b2"]
    w3, b3 = params["w3"], params["b3"]
    H1 = w1.shape[1]
    H2 = w2.shape[1]
    Cp = w3.shape[1]

    # Batch tile: multiple of 16 (bf16 sublane packing). Default 2048 rows is
    # past the HBM-roofline knee and fits comfortably in VMEM on v5e/v6e/v7x.
    tm_eff = min(tm, _round_up(B, 16))
    # Ensure >=2 grid steps where possible so "parallel" can shard the batch
    # across v7x's two TensorCores (no-op on v5e/v6e beyond one extra step).
    if pl.cdiv(B, tm_eff) < 2 and tm_eff >= 32:
        tm_eff = _round_up(tm_eff // 2, 16)

    Bp = _round_up(B, tm_eff)
    # Only ragged batches pay a cheap zero-pad of rows; D stays unpadded and
    # the bf16 cast happens inside the kernel, so x is read from HBM once.
    x_in = x if Bp == B else jnp.pad(x, ((0, Bp - B), (0, 0)))

    grid = (Bp // tm_eff,)

    out_padded = pl.pallas_call(
        mlp_kernel,
        out_shape=jax.ShapeDtypeStruct((Bp, Cp), jnp.bfloat16),
        grid=grid,
        in_specs=[
            pl.BlockSpec((tm_eff, D), lambda i: (i, 0)),   # x: tiled on batch
            pl.BlockSpec((D, H1), lambda i: (0, 0)),       # weights/biases:
            pl.BlockSpec((1, H1), lambda i: (0, 0)),       #   constant index_map
            pl.BlockSpec((H1, H2), lambda i: (0, 0)),      #   -> VMEM-resident
            pl.BlockSpec((1, H2), lambda i: (0, 0)),
            pl.BlockSpec((H2, Cp), lambda i: (0, 0)),
            pl.BlockSpec((1, Cp), lambda i: (0, 0)),
        ],
        out_specs=pl.BlockSpec((tm_eff, Cp), lambda i: (i, 0)),
        compiler_params=pltpu.CompilerParams(
            dimension_semantics=("parallel",),   # 2x on v7x (2 TCs), no-op elsewhere
        ),
    )(x_in, w1, b1, w2, b2, w3, b3)

    # strip batch/class padding; return f32 logits like the PyTorch module
    return out_padded[:B, :num_classes].astype(jnp.float32)


def init_linear(key, fan_in, fan_out):
    """PyTorch-style uniform(-1/sqrt(fan_in), 1/sqrt(fan_in)) init.
    Weight returned transposed to (fan_in, fan_out); bias as (1, fan_out)."""
    kw, kb = jax.random.split(key)
    bound = 1.0 / jnp.sqrt(jnp.float32(fan_in))
    w = jax.random.uniform(kw, (fan_in, fan_out), jnp.float32, -bound, bound)
    b = jax.random.uniform(kb, (1, fan_out), jnp.float32, -bound, bound)
    return w, b


if __name__ == "__main__":
    input_dim, hidden_dim1, hidden_dim2, num_classes = 64, 128, 128, 3
    batch = 8

    key = jax.random.PRNGKey(0)
    kx, k1, k2, k3 = jax.random.split(key, 4)

    x = jax.random.normal(kx, (batch, input_dim), jnp.float32)
    w1, b1 = init_linear(k1, input_dim, hidden_dim1)
    w2, b2 = init_linear(k2, hidden_dim1, hidden_dim2)
    w3, b3 = init_linear(k3, hidden_dim2, num_classes)

    params, _ = prepare_params(w1, b1, w2, b2, w3, b3)

    out = two_hidden_mlp(x, params, num_classes=num_classes)
    out = jax.block_until_ready(out)
    assert out.shape == (batch, num_classes)

    # reference with the same bf16-operand / f32-accumulate recipe
    bf = jnp.bfloat16
    h = jnp.maximum(
        jnp.dot(x.astype(bf), w1.astype(bf), preferred_element_type=jnp.float32) + b1, 0.0)
    h = jnp.maximum(
        jnp.dot(h.astype(bf), w2.astype(bf), preferred_element_type=jnp.float32) + b2, 0.0)
    ref_bf16 = jnp.dot(h.astype(bf), w3.astype(bf),
                       preferred_element_type=jnp.float32) + b3
    # kernel stores logits in bf16 -> one extra rounding step; loose tolerance
    assert jnp.allclose(out, ref_bf16, atol=2e-2, rtol=2e-2)

    # sanity vs. full-f32 reference (bf16 MXU operands + bf16 logit store)
    hf = jnp.maximum(x @ w1 + b1, 0.0)
    hf = jnp.maximum(hf @ w2 + b2, 0.0)
    ref_f32 = hf @ w3 + b3
    assert jnp.allclose(out, ref_f32, atol=7e-2, rtol=7e-2)

    print("KERNEL_OK")
</pallas_src>

<mosaic_0001>
module attributes {stable_mosaic.version = 11 : i64} {
  func.func @mlp_kernel(%arg0: i32, %arg1: memref<16x64xf32, #tpu.memory_space<vmem>>, %arg2: memref<64x128xbf16, #tpu.memory_space<vmem>>, %arg3: memref<1x128xf32, #tpu.memory_space<vmem>>, %arg4: memref<128x128xbf16, #tpu.memory_space<vmem>>, %arg5: memref<1x128xf32, #tpu.memory_space<vmem>>, %arg6: memref<128x128xbf16, #tpu.memory_space<vmem>>, %arg7: memref<1x128xf32, #tpu.memory_space<vmem>>, %arg8: memref<16x128xbf16, #tpu.memory_space<vmem>>) attributes {dimension_semantics = [#tpu.dimension_semantics<parallel>], iteration_bounds = array<i64: 1>, scalar_prefetch = 0 : i64, scratch_operands = 0 : i64, tpu.core_type = #tpu.core_type<tc>, window_params = [{transform_indices = @transform_0, window_bounds = array<i64: 16, 64>}, {pipeline_mode = #tpu.pipeline_mode<synchronous>, transform_indices = @transform_1, window_bounds = array<i64: 64, 128>}, {pipeline_mode = #tpu.pipeline_mode<synchronous>, transform_indices = @transform_2, window_bounds = array<i64: 1, 128>}, {pipeline_mode = #tpu.pipeline_mode<synchronous>, transform_indices = @transform_3, window_bounds = array<i64: 128, 128>}, {pipeline_mode = #tpu.pipeline_mode<synchronous>, transform_indices = @transform_4, window_bounds = array<i64: 1, 128>}, {pipeline_mode = #tpu.pipeline_mode<synchronous>, transform_indices = @transform_5, window_bounds = array<i64: 128, 128>}, {pipeline_mode = #tpu.pipeline_mode<synchronous>, transform_indices = @transform_6, window_bounds = array<i64: 1, 128>}, {transform_indices = @transform_7, window_bounds = array<i64: 16, 128>}]} {
    %c0 = arith.constant 0 : index
    %c0_0 = arith.constant 0 : index
    %0 = vector.load %arg1[%c0, %c0_0] : memref<16x64xf32, #tpu.memory_space<vmem>>, vector<16x64xf32>
    %1 = arith.truncf %0 : vector<16x64xf32> to vector<16x64xbf16>
    %c0_1 = arith.constant 0 : index
    %c0_2 = arith.constant 0 : index
    %2 = vector.load %arg2[%c0_1, %c0_2] : memref<64x128xbf16, #tpu.memory_space<vmem>>, vector<64x128xbf16>
    %cst = arith.constant dense<0.000000e+00> : vector<16x128xf32>
    %3 = tpu.matmul %1, %2, %cst {dimension_numbers = #tpu.dot_dimension_numbers<[1], [0], [0], [1], [0, 0, 1, 1], [], []>} : vector<16x64xbf16>, vector<64x128xbf16>, vector<16x128xf32> -> vector<16x128xf32>
    %c0_3 = arith.constant 0 : index
    %c0_4 = arith.constant 0 : index
    %4 = vector.load %arg3[%c0_3, %c0_4] : memref<1x128xf32, #tpu.memory_space<vmem>>, vector<1x128xf32>
    %5 = vector.broadcast %4 : vector<1x128xf32> to vector<16x128xf32>
    %6 = arith.addf %3, %5 : vector<16x128xf32>
    %cst_5 = arith.constant 0.000000e+00 : f32
    %7 = vector.broadcast %cst_5 : f32 to vector<16x128xf32>
    %8 = arith.maximumf %6, %7 : vector<16x128xf32>
    %9 = arith.truncf %8 : vector<16x128xf32> to vector<16x128xbf16>
    %c0_6 = arith.constant 0 : index
    %c0_7 = arith.constant 0 : index
    %10 = vector.load %arg4[%c0_6, %c0_7] : memref<128x128xbf16, #tpu.memory_space<vmem>>, vector<128x128xbf16>
    %cst_8 = arith.constant dense<0.000000e+00> : vector<16x128xf32>
    %11 = tpu.matmul %9, %10, %cst_8 {dimension_numbers = #tpu.dot_dimension_numbers<[1], [0], [0], [1], [0, 0, 1, 1], [], []>} : vector<16x128xbf16>, vector<128x128xbf16>, vector<16x128xf32> -> vector<16x128xf32>
    %c0_9 = arith.constant 0 : index
    %c0_10 = arith.constant 0 : index
    %12 = vector.load %arg5[%c0_9, %c0_10] : memref<1x128xf32, #tpu.memory_space<vmem>>, vector<1x128xf32>
    %13 = vector.broadcast %12 : vector<1x128xf32> to vector<16x128xf32>
    %14 = arith.addf %11, %13 : vector<16x128xf32>
    %cst_11 = arith.constant 0.000000e+00 : f32
    %15 = vector.broadcast %cst_11 : f32 to vector<16x128xf32>
    %16 = arith.maximumf %14, %15 : vector<16x128xf32>
    %17 = arith.truncf %16 : vector<16x128xf32> to vector<16x128xbf16>
    %c0_12 = arith.constant 0 : index
    %c0_13 = arith.constant 0 : index
    %18 = vector.load %arg6[%c0_12, %c0_13] : memref<128x128xbf16, #tpu.memory_space<vmem>>, vector<128x128xbf16>
    %cst_14 = arith.constant dense<0.000000e+00> : vector<16x128xf32>
    %19 = tpu.matmul %17, %18, %cst_14 {dimension_numbers = #tpu.dot_dimension_numbers<[1], [0], [0], [1], [0, 0, 1, 1], [], []>} : vector<16x128xbf16>, vector<128x128xbf16>, vector<16x128xf32> -> vector<16x128xf32>
    %c0_15 = arith.constant 0 : index
    %c0_16 = arith.constant 0 : index
    %20 = vector.load %arg7[%c0_15, %c0_16] : memref<1x128xf32, #tpu.memory_space<vmem>>, vector<1x128xf32>
    %21 = vector.broadcast %20 : vector<1x128xf32> to vector<16x128xf32>
    %22 = arith.addf %19, %21 : vector<16x128xf32>
    %23 = arith.truncf %22 : vector<16x128xf32> to vector<16x128xbf16>
    %c0_17 = arith.constant 0 : index
    %c0_18 = arith.constant 0 : index
    %24 = vector.load %arg8[%c0_17, %c0_18] : memref<16x128xbf16, #tpu.memory_space<vmem>>, vector<16x128xbf16>
    tpu.vector_store %arg8[%c0_17, %c0_18], %23 {strides = array<i32>} : memref<16x128xbf16, #tpu.memory_space<vmem>>, vector<16x128xbf16>,
    return
  }
  func.func @transform_0(%arg0: i32) -> (i32, i32) {
    %c0_i32 = arith.constant 0 : i32
    %c0_i32_0 = arith.constant 0 : i32
    return %arg0, %c0_i32 : i32, i32
  }
  func.func @transform_1(%arg0: i32) -> (i32, i32) {
    %c0_i32 = arith.constant 0 : i32
    %c0_i32_0 = arith.constant 0 : i32
    %c0_i32_1 = arith.constant 0 : i32
    return %c0_i32, %c0_i32_0 : i32, i32
  }
  func.func @transform_2(%arg0: i32) -> (i32, i32) {
    %c0_i32 = arith.constant 0 : i32
    %c0_i32_0 = arith.constant 0 : i32
    %c0_i32_1 = arith.constant 0 : i32
    return %c0_i32, %c0_i32_0 : i32, i32
  }
  func.func @transform_3(%arg0: i32) -> (i32, i32) {
    %c0_i32 = arith.constant 0 : i32
    %c0_i32_0 = arith.constant 0 : i32
    %c0_i32_1 = arith.constant 0 : i32
    return %c0_i32, %c0_i32_0 : i32, i32
  }
  func.func @transform_4(%arg0: i32) -> (i32, i32) {
    %c0_i32 = arith.constant 0 : i32
    %c0_i32_0 = arith.constant 0 : i32
    %c0_i32_1 = arith.constant 0 : i32
    return %c0_i32, %c0_i32_0 : i32, i32
  }
  func.func @transform_5(%arg0: i32) -> (i32, i32) {
    %c0_i32 = arith.constant 0 : i32
    %c0_i32_0 = arith.constant 0 : i32
    %c0_i32_1 = arith.constant 0 : i32
    return %c0_i32, %c0_i32_0 : i32, i32
  }
  func.func @transform_6(%arg0: i32) -> (i32, i32) {
    %c0_i32 = arith.constant 0 : i32
    %c0_i32_0 = arith.constant 0 : i32
    %c0_i32_1 = arith.constant 0 : i32
    return %c0_i32, %c0_i32_0 : i32, i32
  }
  func.func @transform_7(%arg0: i32) -> (i32, i32) {
    %c0_i32 = arith.constant 0 : i32
    %c0_i32_0 = arith.constant 0 : i32
    return %arg0, %c0_i32 : i32, i32
  }
}

</mosaic_0001>

<llo_original>
// kernel: two_hidden_mlp.1
$region0: #{two_hidden_mlp.1}
  #allocation0 [shape = 'u32[]', space=smem, size = 0x4, offset = 0x4, fixed_abs, tag = 'smem constant byte address 0x4 - core index']
  #allocation1 [shape = 'u32[144,128]{1,0:T(1,128)}', space=vmem, size = 0x12000, scoped, tag = 'internal scratch']
  %s0 = inlined_call_operand.vmem [shape: f32[16,64], index: 0, kind: input, shape index: {}]
  %s1 = inlined_call_operand.vmem [shape: bf16[64,128], index: 1, kind: input, shape index: {}]
  %s2 = inlined_call_operand.hbm [shape: f32[1,128], index: 2, kind: input, shape index: {}]
  %s3 = inlined_call_operand.hbm [shape: bf16[128,128], index: 3, kind: input, shape index: {}]
  %s4 = inlined_call_operand.hbm [shape: f32[1,128], index: 4, kind: input, shape index: {}]
  %s5 = inlined_call_operand.hbm [shape: bf16[128,128], index: 5, kind: input, shape index: {}]
  %s6 = inlined_call_operand.hbm [shape: f32[1,128], index: 6, kind: input, shape index: {}]
  %s7 = inlined_call_operand.vmem [shape: bf16[16,128], index: 7, kind: output, shape index: {}]
  %s8 = sld [smem:[#allocation0]]
  $region58: #{two_hidden_mlp.1} parent=0
    _
  %s10 = ssub.s32 1, %s8
  %s11 = scalar_select 0, %s10, %s8
  $region1: #{two_hidden_mlp.1} parent=0
    #allocation2 [shape = 'u8[512]{0}', space=vmem, size = 0x400, scoped, tag = 'input window, operand 2, single buffered']
    #allocation3 [shape = 's32[1]{0}', space=sflag, size = 0x4, scoped, tag = 'scoped memory for two_hidden_mlp.1']
    #allocation4 [shape = 'u8[32768]{0}', space=vmem, size = 0x8000, scoped, tag = 'input window, operand 3, single buffered']
    #allocation5 [shape = 's32[1]{0}', space=sflag, size = 0x4, scoped, tag = 'scoped memory for two_hidden_mlp.1']
    #allocation6 [shape = 'u8[512]{0}', space=vmem, size = 0x400, scoped, tag = 'input window, operand 4, single buffered']
    #allocation7 [shape = 'u8[32768]{0}', space=vmem, size = 0x8000, scoped, tag = 'input window, operand 5, single buffered']
    #allocation8 [shape = 's32[1]{0}', space=sflag, size = 0x4, scoped, tag = 'scoped memory for two_hidden_mlp.1']
    #allocation9 [shape = 'u8[512]{0}', space=vmem, size = 0x400, scoped, tag = 'input window, operand 6, single buffered']
    %12 = vsyncpa [#allocation3], 0
    %13 = vsyncpa [#allocation5], 0
    %14 = vsyncpa [#allocation8], 0
    // Predicated region
    $region2: #{two_hidden_mlp.1} parent=1 // pred_check
      _
    $region3: #{two_hidden_mlp.1} parent=1 // pred_check_branch
      %16 = sbr.rel (0) target = $region5
    $region4: #{two_hidden_mlp.1} parent=1 // pred_region
      _
    $region5: #{two_hidden_mlp.1} parent=1 // pred_fallthru
      _
    // Predicated region
    $region6: #{two_hidden_mlp.1} parent=1 // pred_check
      _
    $region7: #{two_hidden_mlp.1} parent=1 // pred_check_branch
      %18 = sbr.rel (0) target = $region9
    $region8: #{two_hidden_mlp.1} parent=1 // pred_region
      _
    $region9: #{two_hidden_mlp.1} parent=1 // pred_fallthru
      _
    // Predicated region
    $region10: #{two_hidden_mlp.1} parent=1 // pred_check
      _
    $region11: #{two_hidden_mlp.1} parent=1 // pred_check_branch
      %20 = sbr.rel (0) target = $region13
    $region12: #{two_hidden_mlp.1} parent=1 // pred_region
      %s22 = ssub.s32 16, 16
      %23 = vsyncadd [#allocation3], %s22
      %s25 = sshll.u32 [#allocation2], 4
      %s26 = int_to_ptr.vmem [resolvable:$true] %s25
      %28 = dma.hbm_to_vmem [thread:$0]  %s2, 16, %s26, [#allocation3]
    $region13: #{two_hidden_mlp.1} parent=1 // pred_fallthru
      _
    // Predicated region
    $region14: #{two_hidden_mlp.1} parent=1 // pred_check
      _
    $region15: #{two_hidden_mlp.1} parent=1 // pred_check_branch
      %30 = sbr.rel (0) target = $region17
    $region16: #{two_hidden_mlp.1} parent=1 // pred_region
      %s32 = ssub.s32 1024, 1024
      %33 = vsyncadd [#allocation5], %s32
      %s34 = sshll.u32 [#allocation4], 4
      %s35 = int_to_ptr.vmem [resolvable:$true] %s34
      %40 = dma.hbm_to_vmem [thread:$0]  %s3, 1024, %s35, [#allocation5], 64, 64, 4
    $region17: #{two_hidden_mlp.1} parent=1 // pred_fallthru
      _
    // Predicated region
    $region18: #{two_hidden_mlp.1} parent=1 // pred_check
      _
    $region19: #{two_hidden_mlp.1} parent=1 // pred_check_branch
      %42 = sbr.rel (0) target = $region21
    $region20: #{two_hidden_mlp.1} parent=1 // pred_region
      %s44 = ssub.s32 16, 16
      %45 = vsyncadd [#allocation5], %s44
      %s47 = sshll.u32 [#allocation6], 4
      %s48 = int_to_ptr.vmem [resolvable:$true] %s47
      %50 = dma.hbm_to_vmem [thread:$0]  %s4, 16, %s48, [#allocation5]
    $region21: #{two_hidden_mlp.1} parent=1 // pred_fallthru
      _
    // Predicated region
    $region22: #{two_hidden_mlp.1} parent=1 // pred_check
      _
    $region23: #{two_hidden_mlp.1} parent=1 // pred_check_branch
      %52 = sbr.rel (0) target = $region25
    $region24: #{two_hidden_mlp.1} parent=1 // pred_region
      %s54 = ssub.s32 1024, 1024
      %55 = vsyncadd [#allocation8], %s54
      %s56 = sshll.u32 [#allocation7], 4
      %s57 = int_to_ptr.vmem [resolvable:$true] %s56
      %62 = dma.hbm_to_vmem [thread:$0]  %s5, 1024, %s57, [#allocation8], 64, 64, 4
    $region25: #{two_hidden_mlp.1} parent=1 // pred_fallthru
      _
    // Predicated region
    $region26: #{two_hidden_mlp.1} parent=1 // pred_check
      _
    $region27: #{two_hidden_mlp.1} parent=1 // pred_check_branch
      %64 = sbr.rel (0) target = $region29
    $region28: #{two_hidden_mlp.1} parent=1 // pred_region
      %s66 = ssub.s32 16, 16
      %67 = vsyncadd [#allocation8], %s66
      %s69 = sshll.u32 [#allocation9], 4
      %s70 = int_to_ptr.vmem [resolvable:$true] %s69
      %72 = dma.hbm_to_vmem [thread:$0]  %s6, 16, %s70, [#allocation8]
    $region29: #{two_hidden_mlp.1} parent=1 // pred_fallthru
      _
    // Predicated region
    $region30: #{two_hidden_mlp.1} parent=1 // pred_check
      _
    $region31: #{two_hidden_mlp.1} parent=1 // pred_check_branch
      %74 = sbr.rel (0) target = $region33
    $region32: #{two_hidden_mlp.1} parent=1 // pred_region
      %75 = dma.done [#allocation3], 16
    $region33: #{two_hidden_mlp.1} parent=1 // pred_fallthru
      _
    // Predicated region
    $region34: #{two_hidden_mlp.1} parent=1 // pred_check
      _
    $region35: #{two_hidden_mlp.1} parent=1 // pred_check_branch
      %77 = sbr.rel (0) target = $region37
    $region36: #{two_hidden_mlp.1} parent=1 // pred_region
      %78 = dma.done [#allocation5], 1024
    $region37: #{two_hidden_mlp.1} parent=1 // pred_fallthru
      _
    // Predicated region
    $region38: #{two_hidden_mlp.1} parent=1 // pred_check
      _
    $region39: #{two_hidden_mlp.1} parent=1 // pred_check_branch
      %80 = sbr.rel (0) target = $region41
    $region40: #{two_hidden_mlp.1} parent=1 // pred_region
      %81 = dma.done [#allocation5], 16
    $region41: #{two_hidden_mlp.1} parent=1 // pred_fallthru
      _
    // Predicated region
    $region42: #{two_hidden_mlp.1} parent=1 // pred_check
      _
    $region43: #{two_hidden_mlp.1} parent=1 // pred_check_branch
      %83 = sbr.rel (0) target = $region45
    $region44: #{two_hidden_mlp.1} parent=1 // pred_region
      %84 = dma.done [#allocation8], 1024
    $region45: #{two_hidden_mlp.1} parent=1 // pred_fallthru
      _
    // Predicated region
    $region46: #{two_hidden_mlp.1} parent=1 // pred_check
      _
    $region47: #{two_hidden_mlp.1} parent=1 // pred_check_branch
      %86 = sbr.rel (0) target = $region49
    $region48: #{two_hidden_mlp.1} parent=1 // pred_region
      %87 = dma.done [#allocation8], 16
    $region49: #{two_hidden_mlp.1} parent=1 // pred_fallthru
      _
    %v89 = vld [vmem:[%s0] sm:$0xff]
    %v90 = vld [vmem:[%s0 + $0x8] sm:$0xff]
    %v91 = vpack.c.bf16 %v90, %v89
    %v92 = vld [vmem:[%s1] sm:$0xf]
    %v93 = vld [vmem:[%s1 + $0x4] sm:$0xf]
    %v94 = vld [vmem:[%s1 + $0x8] sm:$0xf]
    %v95 = vld [vmem:[%s1 + $0xc] sm:$0xf]
    %v96 = vld [vmem:[%s1 + $0x10] sm:$0xf]
    %v97 = vld [vmem:[%s1 + $0x14] sm:$0xf]
    %v98 = vld [vmem:[%s1 + $0x18] sm:$0xf]
    %v99 = vld [vmem:[%s1 + $0x1c] sm:$0xf]
    %v100 = vld [vmem:[#allocation2] sm:$0x1]
    %v102 = vlaneseq
    %v103 = vshrl.u32 %v102, 7
    %v104 = vsub.s32 0, %v103
    %v105 = vrot.slane %v100, %v104
    %v115 = vunpack.c.l.b16 %v92
    %v116 = vunpack.c.l.b16 %v93
    %v117 = vunpack.c.l.b16 %v94
    %v118 = vunpack.c.l.b16 %v95
    %v119 = vunpack.c.l.b16 %v96
    %v120 = vunpack.c.l.b16 %v97
    %v121 = vunpack.c.l.b16 %v98
    %v122 = vunpack.c.l.b16 %v99
    %v123 = vpack.c.b16 %v116, %v115
    %v124 = vpack.c.b16 %v118, %v117
    %v125 = vpack.c.b16 %v120, %v119
    %v126 = vpack.c.b16 %v122, %v121
    %vm131 = vcmask 523264
    %v133 = vsel %vm131, %v91, 0
    %135 = vmatprep.subr.bf16.mxu0 0
    %136 = vmatpush1.bf16.msra.mxu0 0
    %137 = vmatprep.subr.bf16.mxu0 0
    %138 = vmatpush1.bf16.msra.mxu0 0
    %139 = vmatprep.subr.bf16.mxu0 0
    %140 = vmatpush1.bf16.msra.mxu0 0
    %141 = vmatprep.subr.bf16.mxu0 0
    %142 = vmatpush1.bf16.msra.mxu0 0
    %143 = vmatprep.subr.bf16.mxu0 0
    %144 = vmatpush1.bf16.msra.mxu0 %v126
    %145 = vmatprep.subr.bf16.mxu0 0
    %146 = vmatpush1.bf16.msra.mxu0 %v125
    %147 = vmatprep.subr.bf16.mxu0 0
    %148 = vmatpush1.bf16.msra.mxu0 %v124
    %149 = vmatprep.subr.bf16.mxu0 0
    %150 = vmatpush1.bf16.msra.mxu0 %v123
    %151 = vmatprep.subr.bf16.mxu0 0
    %152 = vmatpush2.bf16.msra.mxu0 0
    %153 = vmatprep.subr.bf16.mxu0 0
    %154 = vmatpush2.bf16.msra.mxu0 0
    %155 = vmatprep.subr.bf16.mxu0 0
    %156 = vmatpush2.bf16.msra.mxu0 0
    %157 = vmatprep.subr.bf16.mxu0 0
    %158 = vmatpush2.bf16.msra.mxu0 0
    %159 = vmatprep.subr.bf16.mxu0 0
    %160 = vmatpush2.bf16.msra.mxu0 0
    %161 = vmatprep.subr.bf16.mxu0 0
    %162 = vmatpush2.bf16.msra.mxu0 0
    %163 = vmatprep.subr.bf16.mxu0 0
    %164 = vmatpush2.bf16.msra.mxu0 0
    %165 = vmatprep.subr.bf16.mxu0 0
    %166 = vmatpush2.bf16.msra.mxu0 0
    %167 = vmatprep.mubr.bf16.mxu0 0
    %168 = vmatmul.mubr.bf16.gmra.mxu0 %v133
    %v169 = vpop.f32.mrf.mxu0
    %v170 = vadd.f32 %v105, %v169
    %v171 = vpop.f32.mrf.mxu0
    %v172 = vpop.f32.mrf.mxu0
    %v173 = vadd.f32 %v105, %v172
    %v174 = vpop.f32.mrf.mxu0
    %175 = vdwg.mxu0
    %v176 = vmax.f32 %v170, 0.0
    %v177 = vmax.f32 %v173, 0.0
    %v178 = vpack.c.bf16 %v177, %v176
    %v179 = vld [vmem:[#allocation4] sm:$0xf]
    %v180 = vld [vmem:[#allocation4 + $0x4] sm:$0xf]
    %v181 = vld [vmem:[#allocation4 + $0x8] sm:$0xf]
    %v182 = vld [vmem:[#allocation4 + $0xc] sm:$0xf]
    %v183 = vld [vmem:[#allocation4 + $0x10] sm:$0xf]
    %v184 = vld [vmem:[#allocation4 + $0x14] sm:$0xf]
    %v185 = vld [vmem:[#allocation4 + $0x18] sm:$0xf]
    %v186 = vld [vmem:[#allocation4 + $0x1c] sm:$0xf]
    %v187 = vld [vmem:[#allocation4 + $0x20] sm:$0xf]
    %v188 = vld [vmem:[#allocation4 + $0x24] sm:$0xf]
    %v189 = vld [vmem:[#allocation4 + $0x28] sm:$0xf]
    %v190 = vld [vmem:[#allocation4 + $0x2c] sm:$0xf]
    %v191 = vld [vmem:[#allocation4 + $0x30] sm:$0xf]
    %v192 = vld [vmem:[#allocation4 + $0x34] sm:$0xf]
    %v193 = vld [vmem:[#allocation4 + $0x38] sm:$0xf]
    %v194 = vld [vmem:[#allocation4 + $0x3c] sm:$0xf]
    %v195 = vld [vmem:[#allocation6] sm:$0x1]
    %v197 = vlaneseq
    %v198 = vshrl.u32 %v197, 7
    %v199 = vsub.s32 0, %v198
    %v200 = vrot.slane %v195, %v199
    %v218 = vunpack.c.l.b16 %v179
    %v219 = vunpack.c.l.b16 %v180
    %v220 = vunpack.c.l.b16 %v181
    %v221 = vunpack.c.l.b16 %v182
    %v222 = vunpack.c.l.b16 %v183
    %v223 = vunpack.c.l.b16 %v184
    %v224 = vunpack.c.l.b16 %v185
    %v225 = vunpack.c.l.b16 %v186
    %v226 = vunpack.c.l.b16 %v187
    %v227 = vunpack.c.l.b16 %v188
    %v228 = vunpack.c.l.b16 %v189
    %v229 = vunpack.c.l.b16 %v190
    %v230 = vunpack.c.l.b16 %v191
    %v231 = vunpack.c.l.b16 %v192
    %v232 = vunpack.c.l.b16 %v193
    %v233 = vunpack.c.l.b16 %v194
    %v234 = vpack.c.b16 %v219, %v218
    %v235 = vpack.c.b16 %v221, %v220
    %v236 = vpack.c.b16 %v223, %v222
    %v237 = vpack.c.b16 %v225, %v224
    %v238 = vpack.c.b16 %v227, %v226
    %v239 = vpack.c.b16 %v229, %v228
    %v240 = vpack.c.b16 %v231, %v230
    %v241 = vpack.c.b16 %v233, %v232
    %250 = vmatprep.subr.bf16.mxu0 0
    %251 = vmatpush1.bf16.msra.mxu0 %v241
    %252 = vmatprep.subr.bf16.mxu0 0
    %253 = vmatpush1.bf16.msra.mxu0 %v240
    %254 = vmatprep.subr.bf16.mxu0 0
    %255 = vmatpush1.bf16.msra.mxu0 %v239
    %256 = vmatprep.subr.bf16.mxu0 0
    %257 = vmatpush1.bf16.msra.mxu0 %v238
    %258 = vmatprep.subr.bf16.mxu0 0
    %259 = vmatpush1.bf16.msra.mxu0 %v237
    %260 = vmatprep.subr.bf16.mxu0 0
    %261 = vmatpush1.bf16.msra.mxu0 %v236
    %262 = vmatprep.subr.bf16.mxu0 0
    %263 = vmatpush1.bf16.msra.mxu0 %v235
    %264 = vmatprep.subr.bf16.mxu0 0
    %265 = vmatpush1.bf16.msra.mxu0 %v234
    %266 = vmatprep.subr.bf16.mxu0 0
    %267 = vmatpush2.bf16.msra.mxu0 0
    %268 = vmatprep.subr.bf16.mxu0 0
    %269 = vmatpush2.bf16.msra.mxu0 0
    %270 = vmatprep.subr.bf16.mxu0 0
    %271 = vmatpush2.bf16.msra.mxu0 0
    %272 = vmatprep.subr.bf16.mxu0 0
    %273 = vmatpush2.bf16.msra.mxu0 0
    %274 = vmatprep.subr.bf16.mxu0 0
    %275 = vmatpush2.bf16.msra.mxu0 0
    %276 = vmatprep.subr.bf16.mxu0 0
    %277 = vmatpush2.bf16.msra.mxu0 0
    %278 = vmatprep.subr.bf16.mxu0 0
    %279 = vmatpush2.bf16.msra.mxu0 0
    %280 = vmatprep.subr.bf16.mxu0 0
    %281 = vmatpush2.bf16.msra.mxu0 0
    %282 = vmatprep.mubr.bf16.mxu0 0
    %283 = vmatmul.mubr.bf16.gmra.mxu0 %v178
    %v284 = vpop.f32.mrf.mxu0
    %v285 = vadd.f32 %v200, %v284
    %v286 = vpop.f32.mrf.mxu0
    %v287 = vpop.f32.mrf.mxu0
    %v288 = vadd.f32 %v200, %v287
    %v289 = vpop.f32.mrf.mxu0
    %290 = vdwg.mxu0
    %v291 = vmax.f32 %v285, 0.0
    %v292 = vmax.f32 %v288, 0.0
    %v293 = vpack.c.bf16 %v292, %v291
    %v294 = vld [vmem:[#allocation7] sm:$0xf]
    %v295 = vld [vmem:[#allocation7 + $0x4] sm:$0xf]
    %v296 = vld [vmem:[#allocation7 + $0x8] sm:$0xf]
    %v297 = vld [vmem:[#allocation7 + $0xc] sm:$0xf]
    %v298 = vld [vmem:[#allocation7 + $0x10] sm:$0xf]
    %v299 = vld [vmem:[#allocation7 + $0x14] sm:$0xf]
    %v300 = vld [vmem:[#allocation7 + $0x18] sm:$0xf]
    %v301 = vld [vmem:[#allocation7 + $0x1c] sm:$0xf]
    %v302 = vld [vmem:[#allocation7 + $0x20] sm:$0xf]
    %v303 = vld [vmem:[#allocation7 + $0x24] sm:$0xf]
    %v304 = vld [vmem:[#allocation7 + $0x28] sm:$0xf]
    %v305 = vld [vmem:[#allocation7 + $0x2c] sm:$0xf]
    %v306 = vld [vmem:[#allocation7 + $0x30] sm:$0xf]
    %v307 = vld [vmem:[#allocation7 + $0x34] sm:$0xf]
    %v308 = vld [vmem:[#allocation7 + $0x38] sm:$0xf]
    %v309 = vld [vmem:[#allocation7 + $0x3c] sm:$0xf]
    %v310 = vld [vmem:[#allocation9] sm:$0x1]
    %v312 = vlaneseq
    %v313 = vshrl.u32 %v312, 7
    %v314 = vsub.s32 0, %v313
    %v315 = vrot.slane %v310, %v314
    %v333 = vunpack.c.l.b16 %v294
    %v334 = vunpack.c.l.b16 %v295
    %v335 = vunpack.c.l.b16 %v296
    %v336 = vunpack.c.l.b16 %v297
    %v337 = vunpack.c.l.b16 %v298
    %v338 = vunpack.c.l.b16 %v299
    %v339 = vunpack.c.l.b16 %v300
    %v340 = vunpack.c.l.b16 %v301
    %v341 = vunpack.c.l.b16 %v302
    %v342 = vunpack.c.l.b16 %v303
    %v343 = vunpack.c.l.b16 %v304
    %v344 = vunpack.c.l.b16 %v305
    %v345 = vunpack.c.l.b16 %v306
    %v346 = vunpack.c.l.b16 %v307
    %v347 = vunpack.c.l.b16 %v308
    %v348 = vunpack.c.l.b16 %v309
    %v349 = vpack.c.b16 %v334, %v333
    %v350 = vpack.c.b16 %v336, %v335
    %v351 = vpack.c.b16 %v338, %v337
    %v352 = vpack.c.b16 %v340, %v339
    %v353 = vpack.c.b16 %v342, %v341
    %v354 = vpack.c.b16 %v344, %v343
    %v355 = vpack.c.b16 %v346, %v345
    %v356 = vpack.c.b16 %v348, %v347
    %365 = vmatprep.subr.bf16.mxu0 0
    %366 = vmatpush1.bf16.msra.mxu0 %v356
    %367 = vmatprep.subr.bf16.mxu0 0
    %368 = vmatpush1.bf16.msra.mxu0 %v355
    %369 = vmatprep.subr.bf16.mxu0 0
    %370 = vmatpush1.bf16.msra.mxu0 %v354
    %371 = vmatprep.subr.bf16.mxu0 0
    %372 = vmatpush1.bf16.msra.mxu0 %v353
    %373 = vmatprep.subr.bf16.mxu0 0
    %374 = vmatpush1.bf16.msra.mxu0 %v352
    %375 = vmatprep.subr.bf16.mxu0 0
    %376 = vmatpush1.bf16.msra.mxu0 %v351
    %377 = vmatprep.subr.bf16.mxu0 0
    %378 = vmatpush1.bf16.msra.mxu0 %v350
    %379 = vmatprep.subr.bf16.mxu0 0
    %380 = vmatpush1.bf16.msra.mxu0 %v349
    %381 = vmatprep.subr.bf16.mxu0 0
    %382 = vmatpush2.bf16.msra.mxu0 0
    %383 = vmatprep.subr.bf16.mxu0 0
    %384 = vmatpush2.bf16.msra.mxu0 0
    %385 = vmatprep.subr.bf16.mxu0 0
    %386 = vmatpush2.bf16.msra.mxu0 0
    %387 = vmatprep.subr.bf16.mxu0 0
    %388 = vmatpush2.bf16.msra.mxu0 0
    %389 = vmatprep.subr.bf16.mxu0 0
    %390 = vmatpush2.bf16.msra.mxu0 0
    %391 = vmatprep.subr.bf16.mxu0 0
    %392 = vmatpush2.bf16.msra.mxu0 0
    %393 = vmatprep.subr.bf16.mxu0 0
    %394 = vmatpush2.bf16.msra.mxu0 0
    %395 = vmatprep.subr.bf16.mxu0 0
    %396 = vmatpush2.bf16.msra.mxu0 0
    %397 = vmatprep.mubr.bf16.mxu0 0
    %398 = vmatmul.mubr.bf16.gmra.mxu0 %v293
    %v399 = vpop.f32.mrf.mxu0
    %v400 = vadd.f32 %v315, %v399
    %v401 = vpop.f32.mrf.mxu0
    %v402 = vpop.f32.mrf.mxu0
    %v403 = vadd.f32 %v315, %v402
    %v404 = vpop.f32.mrf.mxu0
    %405 = vdwg.mxu0
    %v406 = vpack.c.bf16 %v403, %v400
    %v408 = vunpack.c.l.b16 %v406
    %v409 = vunpack.c.h.b16 %v406
    %v410 = vpack.c.b16 %v408, %v408
    %v411 = vpack.c.b16 %v409, %v409
    %414 = vst [vmem:[%s7] sm:$0xf] %v410
    %415 = vst [vmem:[%s7 + $0x4] sm:$0xf] %v411
    // Predicated region
    $region50: #{two_hidden_mlp.1} parent=1 // pred_check
      _
    $region51: #{two_hidden_mlp.1} parent=1 // pred_check_branch
      %417 = sbr.rel (0) target = $region53
    $region52: #{two_hidden_mlp.1} parent=1 // pred_region
      _
    $region53: #{two_hidden_mlp.1} parent=1 // pred_fallthru
      _
    // Predicated region
    $region54: #{two_hidden_mlp.1} parent=1 // pred_check
      _
    $region55: #{two_hidden_mlp.1} parent=1 // pred_check_branch
      %419 = sbr.rel (0) target = $region57
    $region56: #{two_hidden_mlp.1} parent=1 // pred_region
      _
    $region57: #{two_hidden_mlp.1} parent=1 // pred_fallthru
      _
    %420 = vsyncpa [#allocation3], 1
    %421 = vsyncpa [#allocation5], 1
    %422 = vsyncpa [#allocation8], 1

</llo_original>
